<compile_context>
chip_gen: v6e
topology: v6e:2x2x1
jax: 0.10.0
libtpu: 0.0.40
codegen_flags: <defaults>
</compile_context>

<pallas_src>
import numpy as np

import jax
import jax.numpy as jnp
from jax.experimental import pallas as pl
from jax.experimental.pallas import tpu as pltpu


def _round_up(x, m):
    return ((x + m - 1) // m) * m


# ----------------------------- Pallas kernel --------------------------------

def tower_fused_kernel(xi_ref, pre_ref, wemb_ref, w1e_ref, w1p_ref,
                       b1_ref, w2_ref, b2_ref, o_ref):
    # xi_ref  : (TB, F)            int32   sparse-feature indices (one batch tile)
    # pre_ref : (TB, P)            f32     pretrain embeddings
    # wemb_ref: (F*Vpad, F*D)      bf16    block-diag embedding table (gather matrix)
    # w1e_ref : (F*D,   NH*H1)     bf16    layer-1 weights, embedding rows, heads fused
    # w1p_ref : (P,     NH*H1)     bf16    layer-1 weights, pretrain rows, heads fused
    # b1_ref  : (1,     NH*H1)     f32
    # w2_ref  : (NH, H1, H2)       bf16
    # b2_ref  : (NH, 1,  H2)       f32
    # o_ref   : (TB, NH*H2)        f32 (or bf16)
    nh, h1, h2 = w2_ref.shape
    tb, nf = xi_ref.shape
    k_emb = wemb_ref.shape[0]
    vslot = k_emb // nf
    cdt = w1e_ref.dtype                      # matmul-operand dtype (bf16 or f32)

    # ---- embedding lookup: exact gather via one-hot @ block-diag table -----
    # column c of the one-hot corresponds to (field f = c // vslot, vocab v =
    # c % vslot); row f of the gather picks emb_tables[f, idx] into columns
    # [f*D, (f+1)*D) of the result — i.e. the per-field concat, for free.
    col = jax.lax.broadcasted_iota(jnp.int32, (tb, k_emb), 1)
    onehot = jnp.zeros((tb, k_emb), dtype=cdt)
    for f in range(nf):                       # static unroll over fields
        onehot = onehot + ((xi_ref[:, f:f + 1] + f * vslot) == col).astype(cdt)
    emb = jnp.dot(onehot, wemb_ref[...],
                  preferred_element_type=jnp.float32)          # (TB, F*D) f32

    # ---- layer 1 (heads fused along N); concat expressed as a split matmul -
    h = jnp.dot(emb.astype(cdt), w1e_ref[...],
                preferred_element_type=jnp.float32)
    h = h + jnp.dot(pre_ref[...].astype(cdt), w1p_ref[...],
                    preferred_element_type=jnp.float32)
    h = jnp.maximum(h + b1_ref[...], 0.0)     # ReLU (Dropout p=0.0 -> identity)
    h = h.astype(cdt)

    # ---- layer 2 per head: static unroll, 128-aligned lane-dense stores ----
    for i in range(nh):
        y = jnp.dot(h[:, i * h1:(i + 1) * h1], w2_ref[i],
                    preferred_element_type=jnp.float32)
        y = jnp.maximum(y + b2_ref[i], 0.0)
        o_ref[:, i * h2:(i + 1) * h2] = y.astype(o_ref.dtype)


# ------------------------- one-time weight packing ---------------------------

def pack_tower_params(params, *, compute_dtype=jnp.bfloat16):
    """Pack Tower parameters into the kernel layout. Call ONCE, not per step."""
    emb = params["emb_tables"]                       # (F, V, D) f32
    w1, b1 = params["w1"], params["b1"]              # (NH, D_in, H1), (NH, 1, H1)
    w2, b2 = params["w2"], params["b2"]              # (NH, H1, H2),  (NH, 1, H2)
    F, V, D = emb.shape
    nh, d_in, h1 = w1.shape
    h2 = w2.shape[-1]
    emb_dim = F * D
    pre_dim = d_in - emb_dim
    if pre_dim <= 0:
        # TODO(synk): pretrain_embeddings=None / embedding_dim==0 path not implemented.
        raise NotImplementedError("Tower kernel requires a pretrain feature block")

    vslot = _round_up(V, 8)
    # Block-diagonal "gather" matrix: rows [f*vslot + v] -> emb[f, v] placed in
    # columns [f*D, (f+1)*D).  One-hot @ this matrix == per-field gather+concat.
    w_emb = jnp.zeros((F * vslot, emb_dim), jnp.float32)
    for f in range(F):
        w_emb = w_emb.at[f * vslot:f * vslot + V, f * D:(f + 1) * D].set(emb[f])

    # Fuse heads on layer 1 (N = NH*H1); split K rows into emb / pretrain parts.
    w1_all = jnp.transpose(w1, (1, 0, 2)).reshape(d_in, nh * h1)
    packed = dict(
        w_emb=w_emb.astype(compute_dtype),                         # (F*Vpad, F*D)
        w1e=w1_all[:emb_dim].astype(compute_dtype),                # (F*D, NH*H1)
        w1p=w1_all[emb_dim:].astype(compute_dtype),                # (P,   NH*H1)
        b1=b1.reshape(1, nh * h1).astype(jnp.float32),             # (1,   NH*H1)
        w2=w2.astype(compute_dtype),                               # (NH, H1, H2)
        b2=b2.reshape(nh, 1, h2).astype(jnp.float32),              # (NH, 1,  H2)
        meta=dict(F=F, V=V, D=D, vslot=vslot, pre_dim=pre_dim,
                  nh=nh, h1=h1, h2=h2),                            # static ints
    )
    return packed


# ------------------------------ Tower forward --------------------------------

def tower_forward(packed, x_idx, pretrain_embeddings, *,
                  out_dtype=jnp.float32, max_tile_b=1024):
    """Tower.forward: indices + pretrain -> [B, NH, H2] via one fused kernel."""
    meta = packed["meta"]
    F, vslot, pre_dim = meta["F"], meta["vslot"], meta["pre_dim"]
    nh, h1, h2, D = meta["nh"], meta["h1"], meta["h2"], meta["D"]
    k_emb = F * vslot

    B = x_idx.shape[0]
    if pretrain_embeddings is None:
        # TODO(synk): original module would only accept None when embedding_dim==0.
        pretrain_embeddings = jnp.zeros((B, pre_dim), jnp.float32)

    # Tile rows: multiple of 16 (bf16 sublane packing), cap at max_tile_b, and
    # split into >=2 grid steps when possible so v7x's second TensorCore works.
    tile_b = min(max_tile_b, _round_up(B, 16))
    if _round_up(B, tile_b) // tile_b < 2 and tile_b >= 32:
        tile_b = _round_up(tile_b // 2, 16)
    b_pad = _round_up(B, tile_b)

    xi = x_idx.astype(jnp.int32)
    pre = pretrain_embeddings
    if b_pad != B:
        xi = jnp.pad(xi, ((0, b_pad - B), (0, 0)))       # index 0 -> valid lookup
        pre = jnp.pad(pre, ((0, b_pad - B), (0, 0)))     # padded rows sliced off

    flops = 2 * b_pad * (k_emb * F * D
                         + (F * D + pre_dim) * nh * h1
                         + nh * h1 * h2)
    bytes_accessed = int(
        xi.size * 4 + pre.size * pre.dtype.itemsize
        + sum(packed[k].size * packed[k].dtype.itemsize
              for k in ("w_emb", "w1e", "w1p", "b1", "w2", "b2"))
        + b_pad * nh * h2 * np.dtype(out_dtype).itemsize)

    grid = (b_pad // tile_b,)
    out = pl.pallas_call(
        tower_fused_kernel,
        out_shape=jax.ShapeDtypeStruct((b_pad, nh * h2), out_dtype),
        grid_spec=pltpu.PrefetchScalarGridSpec(
            num_scalar_prefetch=0,
            grid=grid,
            in_specs=[
                pl.BlockSpec((tile_b, F), lambda b: (b, 0)),
                pl.BlockSpec((tile_b, pre_dim), lambda b: (b, 0)),
                # Weight/bias blocks have constant indices along the batch
                # axis -> DMA'd once, VMEM-resident for the whole grid.
                pl.BlockSpec(packed["w_emb"].shape, lambda b: (0, 0)),
                pl.BlockSpec(packed["w1e"].shape, lambda b: (0, 0)),
                pl.BlockSpec(packed["w1p"].shape, lambda b: (0, 0)),
                pl.BlockSpec(packed["b1"].shape, lambda b: (0, 0)),
                pl.BlockSpec(packed["w2"].shape, lambda b: (0, 0, 0)),
                pl.BlockSpec(packed["b2"].shape, lambda b: (0, 0, 0)),
            ],
            out_specs=pl.BlockSpec((tile_b, nh * h2), lambda b: (b, 0)),
        ),
        compiler_params=pltpu.CompilerParams(
            dimension_semantics=("parallel",)),
        cost_estimate=pl.CostEstimate(flops=int(flops), transcendentals=0,
                                      bytes_accessed=bytes_accessed),
    )(xi, pre, packed["w_emb"], packed["w1e"], packed["w1p"],
      packed["b1"], packed["w2"], packed["b2"])

    # Drop batch padding; row-major reshape [B, NH*H2] -> [B, NH, H2] is free
    # (matches torch.stack(results, dim=1) layout, no transpose).
    return out[:B].reshape(B, nh, h2)


# ------------------------- parameter init & reference ------------------------

def init_tower_params(key, *, num_fields=4, vocab=20, dimensions=16,
                      pretrain_dim=32, dnn_size=(256, 128), output=1):
    """Deterministic parameter init (PyTorch-style uniform(+-1/sqrt(fan_in)))."""
    ks = jax.random.split(key, 2 + 4 * output)
    emb_tables = jax.random.normal(
        ks[0], (num_fields, vocab, dimensions), jnp.float32) * 0.05

    d_in = num_fields * dimensions + pretrain_dim
    h1, h2 = dnn_size
    w1s, b1s, w2s, b2s = [], [], [], []
    for i in range(output):
        k1, k2, k3, k4 = ks[2 + 4 * i: 6 + 4 * i]
        lim1 = 1.0 / jnp.sqrt(d_in)
        lim2 = 1.0 / jnp.sqrt(h1)
        w1s.append(jax.random.uniform(k1, (d_in, h1), jnp.float32, -lim1, lim1))
        b1s.append(jax.random.uniform(k2, (1, h1), jnp.float32, -lim1, lim1))
        w2s.append(jax.random.uniform(k3, (h1, h2), jnp.float32, -lim2, lim2))
        b2s.append(jax.random.uniform(k4, (1, h2), jnp.float32, -lim2, lim2))
    return dict(
        emb_tables=emb_tables,
        w1=jnp.stack(w1s), b1=jnp.stack(b1s),
        w2=jnp.stack(w2s), b2=jnp.stack(b2s),
    )


def tower_forward_ref(params, x_idx, pretrain_embeddings,
                      compute_dtype=jnp.bfloat16):
    """Pure-JAX reference (gather -> concat -> per-head MLP), matching operand dtype."""
    # TODO(synk): SENet re-weighting (use_senet=True) not implemented (use_senet=False).
    emb = params["emb_tables"]                       # (F, V, D)
    F = emb.shape[0]
    fields = [emb[f][x_idx[:, f]] for f in range(F)]
    pieces = fields + ([pretrain_embeddings] if pretrain_embeddings is not None else [])
    dnn_input = jnp.concatenate(pieces, axis=1)      # (B, F*D + P)
    x = dnn_input.astype(compute_dtype)
    outs = []
    for i in range(params["w1"].shape[0]):
        h = jnp.dot(x, params["w1"][i].astype(compute_dtype),
                    preferred_element_type=jnp.float32) + params["b1"][i]
        h = jnp.maximum(h, 0.0)
        y = jnp.dot(h.astype(compute_dtype), params["w2"][i].astype(compute_dtype),
                    preferred_element_type=jnp.float32) + params["b2"][i]
        outs.append(jnp.maximum(y, 0.0))
    return jnp.stack(outs, axis=1)


# --------------------------------- main ---------------------------------------

if __name__ == "__main__":
    key = jax.random.PRNGKey(0)
    k_param, k_x, k_pre = jax.random.split(key, 3)

    B = 16            # batch
    NUM_FIELDS = 4    # sparse feature fields ("datatypes")
    VOCAB = 20
    DIM = 16          # dimensions=16
    PRE_DIM = 32      # pretrain_embeddings feature dim
    DNN_SIZE = (256, 128)
    OUTPUT = 2        # number of DNN heads

    params = init_tower_params(
        k_param, num_fields=NUM_FIELDS, vocab=VOCAB, dimensions=DIM,
        pretrain_dim=PRE_DIM, dnn_size=DNN_SIZE, output=OUTPUT)
    # Pack weights once into kernel layout (never per forward call).
    packed = pack_tower_params(params, compute_dtype=jnp.bfloat16)

    x_idx = jax.random.randint(k_x, (B, NUM_FIELDS), 0, VOCAB, dtype=jnp.int32)
    pretrain = jax.random.normal(k_pre, (B, PRE_DIM), jnp.float32)

    out = tower_forward(packed, x_idx, pretrain)
    out = jax.block_until_ready(out)

    ref = tower_forward_ref(params, x_idx, pretrain)
    assert out.shape == (B, OUTPUT, DNN_SIZE[-1]), out.shape
    assert jnp.allclose(out, ref, atol=1e-3, rtol=1e-3), "mismatch vs reference"

    print("KERNEL_OK")
</pallas_src>

<mosaic_0001>
module attributes {stable_mosaic.version = 11 : i64} {
  func.func @tower_fused_kernel(%arg0: i32, %arg1: memref<16x4xi32, #tpu.memory_space<vmem>>, %arg2: memref<16x32xf32, #tpu.memory_space<vmem>>, %arg3: memref<96x64xbf16, #tpu.memory_space<vmem>>, %arg4: memref<64x512xbf16, #tpu.memory_space<vmem>>, %arg5: memref<32x512xbf16, #tpu.memory_space<vmem>>, %arg6: memref<1x512xf32, #tpu.memory_space<vmem>>, %arg7: memref<2x256x128xbf16, #tpu.memory_space<vmem>>, %arg8: memref<2x1x128xf32, #tpu.memory_space<vmem>>, %arg9: memref<16x256xf32, #tpu.memory_space<vmem>>) attributes {dimension_semantics = [#tpu.dimension_semantics<parallel>], iteration_bounds = array<i64: 1>, scalar_prefetch = 0 : i64, scratch_operands = 0 : i64, tpu.core_type = #tpu.core_type<tc>, window_params = [{transform_indices = @transform_0, window_bounds = array<i64: 16, 4>}, {transform_indices = @transform_1, window_bounds = array<i64: 16, 32>}, {pipeline_mode = #tpu.pipeline_mode<synchronous>, transform_indices = @transform_2, window_bounds = array<i64: 96, 64>}, {pipeline_mode = #tpu.pipeline_mode<synchronous>, transform_indices = @transform_3, window_bounds = array<i64: 64, 512>}, {pipeline_mode = #tpu.pipeline_mode<synchronous>, transform_indices = @transform_4, window_bounds = array<i64: 32, 512>}, {pipeline_mode = #tpu.pipeline_mode<synchronous>, transform_indices = @transform_5, window_bounds = array<i64: 1, 512>}, {pipeline_mode = #tpu.pipeline_mode<synchronous>, transform_indices = @transform_6, window_bounds = array<i64: 2, 256, 128>}, {pipeline_mode = #tpu.pipeline_mode<synchronous>, transform_indices = @transform_7, window_bounds = array<i64: 2, 1, 128>}, {transform_indices = @transform_8, window_bounds = array<i64: 16, 256>}]} {
    %0 = tpu.iota {dimensions = array<i32: 1>} : vector<16x96xi32>
    %cst = arith.constant 0.000000e+00 : bf16
    %1 = vector.broadcast %cst : bf16 to vector<16x96xbf16>
    %c0 = arith.constant 0 : index
    %c0_0 = arith.constant 0 : index
    %2 = vector.load %arg1[%c0, %c0_0] : memref<16x4xi32, #tpu.memory_space<vmem>>, vector<16x1xi32>
    %c0_i32 = arith.constant 0 : i32
    %3 = vector.broadcast %c0_i32 : i32 to vector<16x1xi32>
    %4 = arith.addi %2, %3 : vector<16x1xi32>
    %5 = vector.broadcast %4 : vector<16x1xi32> to vector<16x96xi32>
    %6 = arith.cmpi eq, %5, %0 : vector<16x96xi32>
    %7 = arith.extui %6 : vector<16x96xi1> to vector<16x96xi32>
    %8 = arith.sitofp %7 : vector<16x96xi32> to vector<16x96xf32>
    %9 = arith.truncf %8 : vector<16x96xf32> to vector<16x96xbf16>
    %10 = arith.addf %1, %9 : vector<16x96xbf16>
    %c0_1 = arith.constant 0 : index
    %c1 = arith.constant 1 : index
    %11 = vector.load %arg1[%c0_1, %c1] : memref<16x4xi32, #tpu.memory_space<vmem>>, vector<16x1xi32>
    %c24_i32 = arith.constant 24 : i32
    %12 = vector.broadcast %c24_i32 : i32 to vector<16x1xi32>
    %13 = arith.addi %11, %12 : vector<16x1xi32>
    %14 = vector.broadcast %13 : vector<16x1xi32> to vector<16x96xi32>
    %15 = arith.cmpi eq, %14, %0 : vector<16x96xi32>
    %16 = arith.extui %15 : vector<16x96xi1> to vector<16x96xi32>
    %17 = arith.sitofp %16 : vector<16x96xi32> to vector<16x96xf32>
    %18 = arith.truncf %17 : vector<16x96xf32> to vector<16x96xbf16>
    %19 = arith.addf %10, %18 : vector<16x96xbf16>
    %c0_2 = arith.constant 0 : index
    %c2 = arith.constant 2 : index
    %20 = vector.load %arg1[%c0_2, %c2] : memref<16x4xi32, #tpu.memory_space<vmem>>, vector<16x1xi32>
    %c48_i32 = arith.constant 48 : i32
    %21 = vector.broadcast %c48_i32 : i32 to vector<16x1xi32>
    %22 = arith.addi %20, %21 : vector<16x1xi32>
    %23 = vector.broadcast %22 : vector<16x1xi32> to vector<16x96xi32>
    %24 = arith.cmpi eq, %23, %0 : vector<16x96xi32>
    %25 = arith.extui %24 : vector<16x96xi1> to vector<16x96xi32>
    %26 = arith.sitofp %25 : vector<16x96xi32> to vector<16x96xf32>
    %27 = arith.truncf %26 : vector<16x96xf32> to vector<16x96xbf16>
    %28 = arith.addf %19, %27 : vector<16x96xbf16>
    %c0_3 = arith.constant 0 : index
    %c3 = arith.constant 3 : index
    %29 = vector.load %arg1[%c0_3, %c3] : memref<16x4xi32, #tpu.memory_space<vmem>>, vector<16x1xi32>
    %c72_i32 = arith.constant 72 : i32
    %30 = vector.broadcast %c72_i32 : i32 to vector<16x1xi32>
    %31 = arith.addi %29, %30 : vector<16x1xi32>
    %32 = vector.broadcast %31 : vector<16x1xi32> to vector<16x96xi32>
    %33 = arith.cmpi eq, %32, %0 : vector<16x96xi32>
    %34 = arith.extui %33 : vector<16x96xi1> to vector<16x96xi32>
    %35 = arith.sitofp %34 : vector<16x96xi32> to vector<16x96xf32>
    %36 = arith.truncf %35 : vector<16x96xf32> to vector<16x96xbf16>
    %37 = arith.addf %28, %36 : vector<16x96xbf16>
    %c0_4 = arith.constant 0 : index
    %c0_5 = arith.constant 0 : index
    %38 = vector.load %arg3[%c0_4, %c0_5] : memref<96x64xbf16, #tpu.memory_space<vmem>>, vector<96x64xbf16>
    %cst_6 = arith.constant dense<0.000000e+00> : vector<16x64xf32>
    %39 = tpu.matmul %37, %38, %cst_6 {dimension_numbers = #tpu.dot_dimension_numbers<[1], [0], [0], [1], [0, 0, 1, 1], [], []>} : vector<16x96xbf16>, vector<96x64xbf16>, vector<16x64xf32> -> vector<16x64xf32>
    %40 = arith.truncf %39 : vector<16x64xf32> to vector<16x64xbf16>
    %c0_7 = arith.constant 0 : index
    %c0_8 = arith.constant 0 : index
    %41 = vector.load %arg4[%c0_7, %c0_8] : memref<64x512xbf16, #tpu.memory_space<vmem>>, vector<64x512xbf16>
    %cst_9 = arith.constant dense<0.000000e+00> : vector<16x512xf32>
    %42 = tpu.matmul %40, %41, %cst_9 {dimension_numbers = #tpu.dot_dimension_numbers<[1], [0], [0], [1], [0, 0, 1, 1], [], []>} : vector<16x64xbf16>, vector<64x512xbf16>, vector<16x512xf32> -> vector<16x512xf32>
    %c0_10 = arith.constant 0 : index
    %c0_11 = arith.constant 0 : index
    %43 = vector.load %arg2[%c0_10, %c0_11] : memref<16x32xf32, #tpu.memory_space<vmem>>, vector<16x32xf32>
    %44 = arith.truncf %43 : vector<16x32xf32> to vector<16x32xbf16>
    %c0_12 = arith.constant 0 : index
    %c0_13 = arith.constant 0 : index
    %45 = vector.load %arg5[%c0_12, %c0_13] : memref<32x512xbf16, #tpu.memory_space<vmem>>, vector<32x512xbf16>
    %cst_14 = arith.constant dense<0.000000e+00> : vector<16x512xf32>
    %46 = tpu.matmul %44, %45, %cst_14 {dimension_numbers = #tpu.dot_dimension_numbers<[1], [0], [0], [1], [0, 0, 1, 1], [], []>} : vector<16x32xbf16>, vector<32x512xbf16>, vector<16x512xf32> -> vector<16x512xf32>
    %47 = arith.addf %42, %46 : vector<16x512xf32>
    %c0_15 = arith.constant 0 : index
    %c0_16 = arith.constant 0 : index
    %48 = vector.load %arg6[%c0_15, %c0_16] : memref<1x512xf32, #tpu.memory_space<vmem>>, vector<1x512xf32>
    %49 = vector.broadcast %48 : vector<1x512xf32> to vector<16x512xf32>
    %50 = arith.addf %47, %49 : vector<16x512xf32>
    %cst_17 = arith.constant 0.000000e+00 : f32
    %51 = vector.broadcast %cst_17 : f32 to vector<16x512xf32>
    %52 = arith.maximumf %50, %51 : vector<16x512xf32>
    %53 = arith.truncf %52 : vector<16x512xf32> to vector<16x512xbf16>
    %54 = vector.extract_strided_slice %53 {offsets = [0, 0], sizes = [16, 256], strides = [1, 1]} : vector<16x512xbf16> to vector<16x256xbf16>
    %c0_18 = arith.constant 0 : index
    %c0_19 = arith.constant 0 : index
    %c0_20 = arith.constant 0 : index
    %55 = vector.load %arg7[%c0_18, %c0_19, %c0_20] : memref<2x256x128xbf16, #tpu.memory_space<vmem>>, vector<1x256x128xbf16>
    %56 = vector.shape_cast %55 : vector<1x256x128xbf16> to vector<256x128xbf16>
    %cst_21 = arith.constant dense<0.000000e+00> : vector<16x128xf32>
    %57 = tpu.matmul %54, %56, %cst_21 {dimension_numbers = #tpu.dot_dimension_numbers<[1], [0], [0], [1], [0, 0, 1, 1], [], []>} : vector<16x256xbf16>, vector<256x128xbf16>, vector<16x128xf32> -> vector<16x128xf32>
    %c0_22 = arith.constant 0 : index
    %c0_23 = arith.constant 0 : index
    %c0_24 = arith.constant 0 : index
    %58 = vector.load %arg8[%c0_22, %c0_23, %c0_24] : memref<2x1x128xf32, #tpu.memory_space<vmem>>, vector<1x1x128xf32>
    %59 = vector.shape_cast %58 : vector<1x1x128xf32> to vector<1x128xf32>
    %60 = vector.broadcast %59 : vector<1x128xf32> to vector<16x128xf32>
    %61 = arith.addf %57, %60 : vector<16x128xf32>
    %cst_25 = arith.constant 0.000000e+00 : f32
    %62 = vector.broadcast %cst_25 : f32 to vector<16x128xf32>
    %63 = arith.maximumf %61, %62 : vector<16x128xf32>
    %c0_26 = arith.constant 0 : index
    %c0_27 = arith.constant 0 : index
    %64 = vector.load %arg9[%c0_26, %c0_27] : memref<16x256xf32, #tpu.memory_space<vmem>>, vector<16x128xf32>
    tpu.vector_store %arg9[%c0_26, %c0_27], %63 {strides = array<i32>} : memref<16x256xf32, #tpu.memory_space<vmem>>, vector<16x128xf32>,
    %65 = vector.extract_strided_slice %53 {offsets = [0, 256], sizes = [16, 256], strides = [1, 1]} : vector<16x512xbf16> to vector<16x256xbf16>
    %c1_28 = arith.constant 1 : index
    %c0_29 = arith.constant 0 : index
    %c0_30 = arith.constant 0 : index
    %66 = vector.load %arg7[%c1_28, %c0_29, %c0_30] : memref<2x256x128xbf16, #tpu.memory_space<vmem>>, vector<1x256x128xbf16>
    %67 = vector.shape_cast %66 : vector<1x256x128xbf16> to vector<256x128xbf16>
    %cst_31 = arith.constant dense<0.000000e+00> : vector<16x128xf32>
    %68 = tpu.matmul %65, %67, %cst_31 {dimension_numbers = #tpu.dot_dimension_numbers<[1], [0], [0], [1], [0, 0, 1, 1], [], []>} : vector<16x256xbf16>, vector<256x128xbf16>, vector<16x128xf32> -> vector<16x128xf32>
    %c1_32 = arith.constant 1 : index
    %c0_33 = arith.constant 0 : index
    %c0_34 = arith.constant 0 : index
    %69 = vector.load %arg8[%c1_32, %c0_33, %c0_34] : memref<2x1x128xf32, #tpu.memory_space<vmem>>, vector<1x1x128xf32>
    %70 = vector.shape_cast %69 : vector<1x1x128xf32> to vector<1x128xf32>
    %71 = vector.broadcast %70 : vector<1x128xf32> to vector<16x128xf32>
    %72 = arith.addf %68, %71 : vector<16x128xf32>
    %cst_35 = arith.constant 0.000000e+00 : f32
    %73 = vector.broadcast %cst_35 : f32 to vector<16x128xf32>
    %74 = arith.maximumf %72, %73 : vector<16x128xf32>
    %c0_36 = arith.constant 0 : index
    %c128 = arith.constant 128 : index
    %75 = vector.load %arg9[%c0_36, %c128] : memref<16x256xf32, #tpu.memory_space<vmem>>, vector<16x128xf32>
    tpu.vector_store %arg9[%c0_36, %c128], %74 {strides = array<i32>} : memref<16x256xf32, #tpu.memory_space<vmem>>, vector<16x128xf32>,
    return
  }
  func.func @transform_0(%arg0: i32) -> (i32, i32) {
    %c0_i32 = arith.constant 0 : i32
    %c0_i32_0 = arith.constant 0 : i32
    return %arg0, %c0_i32 : i32, i32
  }
  func.func @transform_1(%arg0: i32) -> (i32, i32) {
    %c0_i32 = arith.constant 0 : i32
    %c0_i32_0 = arith.constant 0 : i32
    return %arg0, %c0_i32 : i32, i32
  }
  func.func @transform_2(%arg0: i32) -> (i32, i32) {
    %c0_i32 = arith.constant 0 : i32
    %c0_i32_0 = arith.constant 0 : i32
    %c0_i32_1 = arith.constant 0 : i32
    return %c0_i32, %c0_i32_0 : i32, i32
  }
  func.func @transform_3(%arg0: i32) -> (i32, i32) {
    %c0_i32 = arith.constant 0 : i32
    %c0_i32_0 = arith.constant 0 : i32
    %c0_i32_1 = arith.constant 0 : i32
    return %c0_i32, %c0_i32_0 : i32, i32
  }
  func.func @transform_4(%arg0: i32) -> (i32, i32) {
    %c0_i32 = arith.constant 0 : i32
    %c0_i32_0 = arith.constant 0 : i32
    %c0_i32_1 = arith.constant 0 : i32
    return %c0_i32, %c0_i32_0 : i32, i32
  }
  func.func @transform_5(%arg0: i32) -> (i32, i32) {
    %c0_i32 = arith.constant 0 : i32
    %c0_i32_0 = arith.constant 0 : i32
    %c0_i32_1 = arith.constant 0 : i32
    return %c0_i32, %c0_i32_0 : i32, i32
  }
  func.func @transform_6(%arg0: i32) -> (i32, i32, i32) {
    %c0_i32 = arith.constant 0 : i32
    %c0_i32_0 = arith.constant 0 : i32
    %c0_i32_1 = arith.constant 0 : i32
    %c0_i32_2 = arith.constant 0 : i32
    return %c0_i32, %c0_i32_0, %c0_i32_1 : i32, i32, i32
  }
  func.func @transform_7(%arg0: i32) -> (i32, i32, i32) {
    %c0_i32 = arith.constant 0 : i32
    %c0_i32_0 = arith.constant 0 : i32
    %c0_i32_1 = arith.constant 0 : i32
    %c0_i32_2 = arith.constant 0 : i32
    return %c0_i32, %c0_i32_0, %c0_i32_1 : i32, i32, i32
  }
  func.func @transform_8(%arg0: i32) -> (i32, i32) {
    %c0_i32 = arith.constant 0 : i32
    %c0_i32_0 = arith.constant 0 : i32
    return %arg0, %c0_i32 : i32, i32
  }
}

</mosaic_0001>

<llo_original>
// kernel: tpu_custom_call.1
$region0: #{tpu_custom_call.1}
  #allocation0 [shape = 'u32[]', space=smem, size = 0x4, offset = 0x4, fixed_abs, tag = 'smem constant byte address 0x4 - core index']
  #allocation1 [shape = 'u32[144,128]{1,0:T(1,128)}', space=vmem, size = 0x12000, scoped, tag = 'internal scratch']
  %s0 = inlined_call_operand.vmem [shape: s32[16,4], index: 0, kind: input, shape index: {}]
  %s1 = inlined_call_operand.vmem [shape: f32[16,32], index: 1, kind: input, shape index: {}]
  %s2 = inlined_call_operand.vmem [shape: bf16[96,64], index: 2, kind: input, shape index: {}]
  %s3 = inlined_call_operand.hbm [shape: bf16[64,512], index: 3, kind: input, shape index: {}]
  %s4 = inlined_call_operand.vmem [shape: bf16[32,512], index: 4, kind: input, shape index: {}]
  %s5 = inlined_call_operand.vmem [shape: f32[1,512], index: 5, kind: input, shape index: {}]
  %s6 = inlined_call_operand.hbm [shape: bf16[2,256,128], index: 6, kind: input, shape index: {}]
  %s7 = inlined_call_operand.vmem [shape: f32[2,1,128], index: 7, kind: input, shape index: {}]
  %s8 = inlined_call_operand.hbm [shape: f32[16,256], index: 8, kind: output, shape index: {}]
  %s9 = sld [smem:[#allocation0]]
  $region50: #{tpu_custom_call.1} parent=0
    _
  %s11 = ssub.s32 1, %s9
  %s12 = scalar_select 0, %s11, %s9
  $region1: #{tpu_custom_call.1} parent=0
    #allocation2 [shape = 'u8[65536]{0}', space=vmem, size = 0x10000, scoped, tag = 'input window, operand 3, single buffered']
    #allocation3 [shape = 's32[1]{0}', space=sflag, size = 0x4, scoped, tag = 'scoped memory for tpu_custom_call.1']
    #allocation4 [shape = 's32[1]{0}', space=sflag, size = 0x4, scoped, tag = 'scoped memory for tpu_custom_call.1']
    #allocation5 [shape = 'u8[131072]{0}', space=vmem, size = 0x20000, scoped, tag = 'input window, operand 6, single buffered']
    #allocation6 [shape = 's32[1]{0}', space=sflag, size = 0x4, scoped, tag = 'scoped memory for tpu_custom_call.1']
    #allocation7 [shape = 'u8[16384]{0}', space=vmem, size = 0x4000, scoped, tag = 'output window, operand 0, single buffered']
    %13 = vsyncpa [#allocation3], 0
    %14 = vsyncpa [#allocation6], 0
    %15 = vsyncpa [#allocation4], 0
    // Predicated region
    $region2: #{tpu_custom_call.1} parent=1 // pred_check
      _
    $region3: #{tpu_custom_call.1} parent=1 // pred_check_branch
      %17 = sbr.rel (0) target = $region5
    $region4: #{tpu_custom_call.1} parent=1 // pred_region
      _
    $region5: #{tpu_custom_call.1} parent=1 // pred_fallthru
      _
    // Predicated region
    $region6: #{tpu_custom_call.1} parent=1 // pred_check
      _
    $region7: #{tpu_custom_call.1} parent=1 // pred_check_branch
      %19 = sbr.rel (0) target = $region9
    $region8: #{tpu_custom_call.1} parent=1 // pred_region
      _
    $region9: #{tpu_custom_call.1} parent=1 // pred_fallthru
      _
    // Predicated region
    $region10: #{tpu_custom_call.1} parent=1 // pred_check
      _
    $region11: #{tpu_custom_call.1} parent=1 // pred_check_branch
      %21 = sbr.rel (0) target = $region13
    $region12: #{tpu_custom_call.1} parent=1 // pred_region
      _
    $region13: #{tpu_custom_call.1} parent=1 // pred_fallthru
      _
    // Predicated region
    $region14: #{tpu_custom_call.1} parent=1 // pred_check
      _
    $region15: #{tpu_custom_call.1} parent=1 // pred_check_branch
      %23 = sbr.rel (0) target = $region17
    $region16: #{tpu_custom_call.1} parent=1 // pred_region
      %s25 = ssub.s32 2048, 2048
      %26 = vsyncadd [#allocation3], %s25
      %s27 = sshll.u32 [#allocation2], 4
      %s28 = int_to_ptr.vmem [resolvable:$true] %s27
      %33 = dma.hbm_to_vmem [thread:$0]  %s3, 2048, %s28, [#allocation3], 256, 256, 16
    $region17: #{tpu_custom_call.1} parent=1 // pred_fallthru
      _
    // Predicated region
    $region18: #{tpu_custom_call.1} parent=1 // pred_check
      _
    $region19: #{tpu_custom_call.1} parent=1 // pred_check_branch
      %35 = sbr.rel (0) target = $region21
    $region20: #{tpu_custom_call.1} parent=1 // pred_region
      _
    $region21: #{tpu_custom_call.1} parent=1 // pred_fallthru
      _
    // Predicated region
    $region22: #{tpu_custom_call.1} parent=1 // pred_check
      _
    $region23: #{tpu_custom_call.1} parent=1 // pred_check_branch
      %37 = sbr.rel (0) target = $region25
    $region24: #{tpu_custom_call.1} parent=1 // pred_region
      _
    $region25: #{tpu_custom_call.1} parent=1 // pred_fallthru
      _
    // Predicated region
    $region26: #{tpu_custom_call.1} parent=1 // pred_check
      _
    $region27: #{tpu_custom_call.1} parent=1 // pred_check_branch
      %39 = sbr.rel (0) target = $region29
    $region28: #{tpu_custom_call.1} parent=1 // pred_region
      %s41 = ssub.s32 4096, 4096
      %42 = vsyncadd [#allocation6], %s41
      %s43 = sshll.u32 [#allocation5], 4
      %s44 = int_to_ptr.vmem [resolvable:$true] %s43
      %49 = dma.hbm_to_vmem [thread:$0]  %s6, 4096, %s44, [#allocation6], 64, 64, 4
    $region29: #{tpu_custom_call.1} parent=1 // pred_fallthru
      _
    // Predicated region
    $region30: #{tpu_custom_call.1} parent=1 // pred_check
      _
    $region31: #{tpu_custom_call.1} parent=1 // pred_check_branch
      %51 = sbr.rel (0) target = $region33
    $region32: #{tpu_custom_call.1} parent=1 // pred_region
      _
    $region33: #{tpu_custom_call.1} parent=1 // pred_fallthru
      _
    // Predicated region
    $region34: #{tpu_custom_call.1} parent=1 // pred_check
      _
    $region35: #{tpu_custom_call.1} parent=1 // pred_check_branch
      %53 = sbr.rel (0) target = $region37
    $region36: #{tpu_custom_call.1} parent=1 // pred_region
      %54 = dma.done [#allocation3], 2048
    $region37: #{tpu_custom_call.1} parent=1 // pred_fallthru
      _
    // Predicated region
    $region38: #{tpu_custom_call.1} parent=1 // pred_check
      _
    $region39: #{tpu_custom_call.1} parent=1 // pred_check_branch
      %56 = sbr.rel (0) target = $region41
    $region40: #{tpu_custom_call.1} parent=1 // pred_region
      %57 = dma.done [#allocation6], 4096
    $region41: #{tpu_custom_call.1} parent=1 // pred_fallthru
      _
    %v59 = vlaneseq
    %v60 = vand.u32 %v59, 127
    %v61 = vld [vmem:[%s0] sm:$0xff]
    %v62 = vld [vmem:[%s0 + $0x8] sm:$0xff]
    %63 = vset.pattern.permute.xlu0 0
    %64 = vperm.xlu0 %63, %v61
    %v65 = vpop.permute.xlu0 %64
    %66 = vset.pattern.permute.xlu0 0
    %67 = vperm.xlu0 %66, %v62
    %v68 = vpop.permute.xlu0 %67
    %vm69 = vcmp.eq.s32.totalorder %v65, %v60
    %vm70 = vcmp.eq.s32.totalorder %v68, %v60
    %v71 = vsel %vm69, 1, 0
    %v72 = vsel %vm70, 1, 0
    %v73 = vcvt.s32.f32 %v71
    %v74 = vcvt.s32.f32 %v72
    %v75 = vpack.c.bf16 %v74, %v73
    %v76 = vadd.bf16 %v75, 0
    %v77 = vadd.s32 %v61, 24
    %v78 = vadd.s32 %v62, 24
    %79 = vset.pattern.permute.xlu0 1
    %80 = vperm.xlu0 %79, %v77
    %v81 = vpop.permute.xlu0 %80
    %82 = vset.pattern.permute.xlu0 1
    %83 = vperm.xlu0 %82, %v78
    %v84 = vpop.permute.xlu0 %83
    %vm85 = vcmp.eq.s32.totalorder %v81, %v60
    %vm86 = vcmp.eq.s32.totalorder %v84, %v60
    %v87 = vsel %vm85, 1, 0
    %v88 = vsel %vm86, 1, 0
    %v89 = vcvt.s32.f32 %v87
    %v90 = vcvt.s32.f32 %v88
    %v91 = vpack.c.bf16 %v90, %v89
    %v92 = vadd.bf16 %v76, %v91
    %v93 = vadd.s32 %v61, 48
    %v94 = vadd.s32 %v62, 48
    %95 = vset.pattern.permute.xlu0 2
    %96 = vperm.xlu0 %95, %v93
    %v97 = vpop.permute.xlu0 %96
    %98 = vset.pattern.permute.xlu0 2
    %99 = vperm.xlu0 %98, %v94
    %v100 = vpop.permute.xlu0 %99
    %vm101 = vcmp.eq.s32.totalorder %v97, %v60
    %vm102 = vcmp.eq.s32.totalorder %v100, %v60
    %v103 = vsel %vm101, 1, 0
    %v104 = vsel %vm102, 1, 0
    %v105 = vcvt.s32.f32 %v103
    %v106 = vcvt.s32.f32 %v104
    %v107 = vpack.c.bf16 %v106, %v105
    %v108 = vadd.bf16 %v92, %v107
    %v109 = vadd.s32 %v61, 72
    %v110 = vadd.s32 %v62, 72
    %111 = vset.pattern.permute.xlu0 3
    %112 = vperm.xlu0 %111, %v109
    %v113 = vpop.permute.xlu0 %112
    %114 = vset.pattern.permute.xlu0 3
    %115 = vperm.xlu0 %114, %v110
    %v116 = vpop.permute.xlu0 %115
    %vm117 = vcmp.eq.s32.totalorder %v113, %v60
    %vm118 = vcmp.eq.s32.totalorder %v116, %v60
    %v119 = vsel %vm117, 1, 0
    %v120 = vsel %vm118, 1, 0
    %v121 = vcvt.s32.f32 %v119
    %v122 = vcvt.s32.f32 %v120
    %v123 = vpack.c.bf16 %v122, %v121
    %v124 = vadd.bf16 %v108, %v123
    %v125 = vld [vmem:[%s2] sm:$0xf]
    %v126 = vld [vmem:[%s2 + $0x4] sm:$0xf]
    %v127 = vld [vmem:[%s2 + $0x8] sm:$0xf]
    %v128 = vld [vmem:[%s2 + $0xc] sm:$0xf]
    %v129 = vld [vmem:[%s2 + $0x10] sm:$0xf]
    %v130 = vld [vmem:[%s2 + $0x14] sm:$0xf]
    %v131 = vld [vmem:[%s2 + $0x18] sm:$0xf]
    %v132 = vld [vmem:[%s2 + $0x1c] sm:$0xf]
    %v133 = vld [vmem:[%s2 + $0x20] sm:$0xf]
    %v134 = vld [vmem:[%s2 + $0x24] sm:$0xf]
    %v135 = vld [vmem:[%s2 + $0x28] sm:$0xf]
    %v136 = vld [vmem:[%s2 + $0x2c] sm:$0xf]
    %v149 = vunpack.c.l.b16 %v125
    %v150 = vunpack.c.l.b16 %v126
    %v151 = vunpack.c.l.b16 %v127
    %v152 = vunpack.c.l.b16 %v128
    %v153 = vunpack.c.l.b16 %v129
    %v154 = vunpack.c.l.b16 %v130
    %v155 = vunpack.c.l.b16 %v131
    %v156 = vunpack.c.l.b16 %v132
    %v157 = vunpack.c.l.b16 %v133
    %v158 = vunpack.c.l.b16 %v134
    %v159 = vunpack.c.l.b16 %v135
    %v160 = vunpack.c.l.b16 %v136
    %v161 = vpack.c.b16 %v150, %v149
    %v162 = vpack.c.b16 %v152, %v151
    %v163 = vpack.c.b16 %v154, %v153
    %v164 = vpack.c.b16 %v156, %v155
    %v165 = vpack.c.b16 %v158, %v157
    %v166 = vpack.c.b16 %v160, %v159
    %vm173 = vcmask 785408
    %v175 = vsel %vm173, %v124, 0
    %177 = vmatprep.subr.bf16.mxu0 0
    %178 = vmatpush1.bf16.msra.mxu0 0
    %179 = vmatprep.subr.bf16.mxu0 0
    %180 = vmatpush1.bf16.msra.mxu0 0
    %181 = vmatprep.subr.bf16.mxu0 0
    %182 = vmatpush1.bf16.msra.mxu0 %v166
    %183 = vmatprep.subr.bf16.mxu0 0
    %184 = vmatpush1.bf16.msra.mxu0 %v165
    %185 = vmatprep.subr.bf16.mxu0 0
    %186 = vmatpush1.bf16.msra.mxu0 %v164
    %187 = vmatprep.subr.bf16.mxu0 0
    %188 = vmatpush1.bf16.msra.mxu0 %v163
    %189 = vmatprep.subr.bf16.mxu0 0
    %190 = vmatpush1.bf16.msra.mxu0 %v162
    %191 = vmatprep.subr.bf16.mxu0 0
    %192 = vmatpush1.bf16.msra.mxu0 %v161
    %193 = vmatprep.subr.bf16.mxu0 0
    %194 = vmatpush2.bf16.msra.mxu0 0
    %195 = vmatprep.subr.bf16.mxu0 0
    %196 = vmatpush2.bf16.msra.mxu0 0
    %197 = vmatprep.subr.bf16.mxu0 0
    %198 = vmatpush2.bf16.msra.mxu0 0
    %199 = vmatprep.subr.bf16.mxu0 0
    %200 = vmatpush2.bf16.msra.mxu0 0
    %201 = vmatprep.subr.bf16.mxu0 0
    %202 = vmatpush2.bf16.msra.mxu0 0
    %203 = vmatprep.subr.bf16.mxu0 0
    %204 = vmatpush2.bf16.msra.mxu0 0
    %205 = vmatprep.subr.bf16.mxu0 0
    %206 = vmatpush2.bf16.msra.mxu0 0
    %207 = vmatprep.subr.bf16.mxu0 0
    %208 = vmatpush2.bf16.msra.mxu0 0
    %209 = vmatprep.mubr.bf16.mxu0 0
    %210 = vmatmul.mubr.bf16.gmra.mxu0 %v175
    %v211 = vpop.f32.mrf.mxu0
    %v212 = vadd.f32 0.0, %v211
    %v213 = vpop.f32.mrf.mxu0
    %v214 = vpop.f32.mrf.mxu0
    %v215 = vadd.f32 0.0, %v214
    %v216 = vpop.f32.mrf.mxu0
    %217 = vdwg.mxu0
    %v218 = vpack.c.bf16 %v215, %v212
    %v219 = vld [vmem:[#allocation2] sm:$0xff]
    %v220 = vld [vmem:[#allocation2 + $0x8] sm:$0xff]
    %v221 = vld [vmem:[#allocation2 + $0x10] sm:$0xff]
    %v222 = vld [vmem:[#allocation2 + $0x18] sm:$0xff]
    %v223 = vld [vmem:[#allocation2 + $0x20] sm:$0xff]
    %v224 = vld [vmem:[#allocation2 + $0x28] sm:$0xff]
    %v225 = vld [vmem:[#allocation2 + $0x30] sm:$0xff]
    %v226 = vld [vmem:[#allocation2 + $0x38] sm:$0xff]
    %v227 = vld [vmem:[#allocation2 + $0x40] sm:$0xff]
    %v228 = vld [vmem:[#allocation2 + $0x48] sm:$0xff]
    %v229 = vld [vmem:[#allocation2 + $0x50] sm:$0xff]
    %v230 = vld [vmem:[#allocation2 + $0x58] sm:$0xff]
    %v231 = vld [vmem:[#allocation2 + $0x60] sm:$0xff]
    %v232 = vld [vmem:[#allocation2 + $0x68] sm:$0xff]
    %v233 = vld [vmem:[#allocation2 + $0x70] sm:$0xff]
    %v234 = vld [vmem:[#allocation2 + $0x78] sm:$0xff]
    %v235 = vld [vmem:[%s1] sm:$0xff]
    %v236 = vld [vmem:[%s1 + $0x8] sm:$0xff]
    %v237 = vpack.c.bf16 %v236, %v235
    %v238 = vld [vmem:[%s4] sm:$0xff]
    %v239 = vld [vmem:[%s4 + $0x8] sm:$0xff]
    %v240 = vld [vmem:[%s4 + $0x10] sm:$0xff]
    %v241 = vld [vmem:[%s4 + $0x18] sm:$0xff]
    %v242 = vld [vmem:[%s4 + $0x20] sm:$0xff]
    %v243 = vld [vmem:[%s4 + $0x28] sm:$0xff]
    %v244 = vld [vmem:[%s4 + $0x30] sm:$0xff]
    %v245 = vld [vmem:[%s4 + $0x38] sm:$0xff]
    %v254 = vunpack.c.l.b16 %v238
    %v255 = vunpack.c.h.b16 %v238
    %v256 = vunpack.c.l.b16 %v239
    %v257 = vunpack.c.h.b16 %v239
    %v258 = vunpack.c.l.b16 %v240
    %v259 = vunpack.c.h.b16 %v240
    %v260 = vunpack.c.l.b16 %v241
    %v261 = vunpack.c.h.b16 %v241
    %v262 = vunpack.c.l.b16 %v242
    %v263 = vunpack.c.h.b16 %v242
    %v264 = vunpack.c.l.b16 %v243
    %v265 = vunpack.c.h.b16 %v243
    %v266 = vunpack.c.l.b16 %v244
    %v267 = vunpack.c.h.b16 %v244
    %v268 = vunpack.c.l.b16 %v245
    %v269 = vunpack.c.h.b16 %v245
    %v270 = vpack.c.b16 %v258, %v254
    %v271 = vpack.c.b16 %v259, %v255
    %v272 = vpack.c.b16 %v260, %v256
    %v273 = vpack.c.b16 %v261, %v257
    %v274 = vpack.c.b16 %v266, %v262
    %v275 = vpack.c.b16 %v267, %v263
    %v276 = vpack.c.b16 %v268, %v264
    %v277 = vpack.c.b16 %v269, %v265
    %vm286 = vcmask 261120
    %v288 = vsel %vm286, %v237, 0
    %290 = vmatprep.subr.bf16.mxu0 0
    %291 = vmatpush1.bf16.msra.mxu0 0
    %292 = vmatprep.subr.bf16.mxu0 0
    %293 = vmatpush1.bf16.msra.mxu0 0
    %294 = vmatprep.subr.bf16.mxu0 0
    %295 = vmatpush1.bf16.msra.mxu0 0
    %296 = vmatprep.subr.bf16.mxu0 0
    %297 = vmatpush1.bf16.msra.mxu0 0
    %298 = vmatprep.subr.bf16.mxu0 0
    %299 = vmatpush1.bf16.msra.mxu0 0
    %300 = vmatprep.subr.bf16.mxu0 0
    %301 = vmatpush1.bf16.msra.mxu0 0
    %302 = vmatprep.subr.bf16.mxu0 %v275
    %303 = vmatpush1.bf16.msra.mxu0 %v274
    %304 = vmatprep.subr.bf16.mxu0 %v271
    %305 = vmatpush1.bf16.msra.mxu0 %v270
    %306 = vmatprep.subr.bf16.mxu0 0
    %307 = vmatpush2.bf16.msra.mxu0 0
    %308 = vmatprep.subr.bf16.mxu0 0
    %309 = vmatpush2.bf16.msra.mxu0 0
    %310 = vmatprep.subr.bf16.mxu0 0
    %311 = vmatpush2.bf16.msra.mxu0 0
    %312 = vmatprep.subr.bf16.mxu0 0
    %313 = vmatpush2.bf16.msra.mxu0 0
    %314 = vmatprep.subr.bf16.mxu0 0
    %315 = vmatpush2.bf16.msra.mxu0 0
    %316 = vmatprep.subr.bf16.mxu0 0
    %317 = vmatpush2.bf16.msra.mxu0 0
    %318 = vmatprep.subr.bf16.mxu0 0
    %319 = vmatpush2.bf16.msra.mxu0 0
    %320 = vmatprep.subr.bf16.mxu0 0
    %321 = vmatpush2.bf16.msra.mxu0 0
    %322 = vmatprep.mubr.bf16.mxu0 0
    %323 = vmatmul.mubr.bf16.gmra.mxu0 %v288
    %v324 = vpop.f32.mrf.mxu0
    %v325 = vadd.f32 0.0, %v324
    %v326 = vpop.f32.mrf.mxu0
    %v327 = vadd.f32 0.0, %v326
    %v328 = vpop.f32.mrf.mxu0
    %v329 = vadd.f32 0.0, %v328
    %v330 = vpop.f32.mrf.mxu0
    %v331 = vadd.f32 0.0, %v330
    %332 = vdwg.mxu0
    %333 = vmatprep.subr.bf16.mxu0 0
    %334 = vmatpush1.bf16.msra.mxu0 0
    %335 = vmatprep.subr.bf16.mxu0 0
    %336 = vmatpush1.bf16.msra.mxu0 0
    %337 = vmatprep.subr.bf16.mxu0 0
    %338 = vmatpush1.bf16.msra.mxu0 0
    %339 = vmatprep.subr.bf16.mxu0 0
    %340 = vmatpush1.bf16.msra.mxu0 0
    %341 = vmatprep.subr.bf16.mxu0 0
    %342 = vmatpush1.bf16.msra.mxu0 0
    %343 = vmatprep.subr.bf16.mxu0 0
    %344 = vmatpush1.bf16.msra.mxu0 0
    %345 = vmatprep.subr.bf16.mxu0 %v277
    %346 = vmatpush1.bf16.msra.mxu0 %v276
    %347 = vmatprep.subr.bf16.mxu0 %v273
    %348 = vmatpush1.bf16.msra.mxu0 %v272
    %349 = vmatprep.subr.bf16.mxu0 0
    %350 = vmatpush2.bf16.msra.mxu0 0
    %351 = vmatprep.subr.bf16.mxu0 0
    %352 = vmatpush2.bf16.msra.mxu0 0
    %353 = vmatprep.subr.bf16.mxu0 0
    %354 = vmatpush2.bf16.msra.mxu0 0
    %355 = vmatprep.subr.bf16.mxu0 0
    %356 = vmatpush2.bf16.msra.mxu0 0
    %357 = vmatprep.subr.bf16.mxu0 0
    %358 = vmatpush2.bf16.msra.mxu0 0
    %359 = vmatprep.subr.bf16.mxu0 0
    %360 = vmatpush2.bf16.msra.mxu0 0
    %361 = vmatprep.subr.bf16.mxu0 0
    %362 = vmatpush2.bf16.msra.mxu0 0
    %363 = vmatprep.subr.bf16.mxu0 0
    %364 = vmatpush2.bf16.msra.mxu0 0
    %365 = vmatprep.mubr.bf16.mxu0 0
    %366 = vmatmul.mubr.bf16.gmra.mxu0 %v288
    %v367 = vpop.f32.mrf.mxu0
    %v368 = vadd.f32 0.0, %v367
    %v369 = vpop.f32.mrf.mxu0
    %v370 = vadd.f32 0.0, %v369
    %v371 = vpop.f32.mrf.mxu0
    %v372 = vadd.f32 0.0, %v371
    %v373 = vpop.f32.mrf.mxu0
    %v374 = vadd.f32 0.0, %v373
    %375 = vdwg.mxu0
    %v392 = vunpack.c.l.b16 %v219
    %v393 = vunpack.c.h.b16 %v219
    %v394 = vunpack.c.l.b16 %v220
    %v395 = vunpack.c.h.b16 %v220
    %v396 = vunpack.c.l.b16 %v221
    %v397 = vunpack.c.h.b16 %v221
    %v398 = vunpack.c.l.b16 %v222
    %v399 = vunpack.c.h.b16 %v222
    %v400 = vunpack.c.l.b16 %v223
    %v401 = vunpack.c.h.b16 %v223
    %v402 = vunpack.c.l.b16 %v224
    %v403 = vunpack.c.h.b16 %v224
    %v404 = vunpack.c.l.b16 %v225
    %v405 = vunpack.c.h.b16 %v225
    %v406 = vunpack.c.l.b16 %v226
    %v407 = vunpack.c.h.b16 %v226
    %v408 = vunpack.c.l.b16 %v227
    %v409 = vunpack.c.h.b16 %v227
    %v410 = vunpack.c.l.b16 %v228
    %v411 = vunpack.c.h.b16 %v228
    %v412 = vunpack.c.l.b16 %v229
    %v413 = vunpack.c.h.b16 %v229
    %v414 = vunpack.c.l.b16 %v230
    %v415 = vunpack.c.h.b16 %v230
    %v416 = vunpack.c.l.b16 %v231
    %v417 = vunpack.c.h.b16 %v231
    %v418 = vunpack.c.l.b16 %v232
    %v419 = vunpack.c.h.b16 %v232
    %v420 = vunpack.c.l.b16 %v233
    %v421 = vunpack.c.h.b16 %v233
    %v422 = vunpack.c.l.b16 %v234
    %v423 = vunpack.c.h.b16 %v234
    %v424 = vpack.c.b16 %v396, %v392
    %v425 = vpack.c.b16 %v397, %v393
    %v426 = vpack.c.b16 %v398, %v394
    %v427 = vpack.c.b16 %v399, %v395
    %v428 = vpack.c.b16 %v404, %v400
    %v429 = vpack.c.b16 %v405, %v401
    %v430 = vpack.c.b16 %v406, %v402
    %v431 = vpack.c.b16 %v407, %v403
    %v432 = vpack.c.b16 %v412, %v408
    %v433 = vpack.c.b16 %v413, %v409
    %v434 = vpack.c.b16 %v414, %v410
    %v435 = vpack.c.b16 %v415, %v411
    %v436 = vpack.c.b16 %v420, %v416
    %v437 = vpack.c.b16 %v421, %v417
    %v438 = vpack.c.b16 %v422, %v418
    %v439 = vpack.c.b16 %v423, %v419
    %vm456 = vcmask 523264
    %v458 = vsel %vm456, %v218, 0
    %460 = vmatprep.subr.bf16.mxu0 0
    %461 = vmatpush1.bf16.msra.mxu0 0
    %462 = vmatprep.subr.bf16.mxu0 0
    %463 = vmatpush1.bf16.msra.mxu0 0
    %464 = vmatprep.subr.bf16.mxu0 0
    %465 = vmatpush1.bf16.msra.mxu0 0
    %466 = vmatprep.subr.bf16.mxu0 0
    %467 = vmatpush1.bf16.msra.mxu0 0
    %468 = vmatprep.subr.bf16.mxu0 %v437
    %469 = vmatpush1.bf16.msra.mxu0 %v436
    %470 = vmatprep.subr.bf16.mxu0 %v433
    %471 = vmatpush1.bf16.msra.mxu0 %v432
    %472 = vmatprep.subr.bf16.mxu0 %v429
    %473 = vmatpush1.bf16.msra.mxu0 %v428
    %474 = vmatprep.subr.bf16.mxu0 %v425
    %475 = vmatpush1.bf16.msra.mxu0 %v424
    %476 = vmatprep.subr.bf16.mxu0 0
    %477 = vmatpush2.bf16.msra.mxu0 0
    %478 = vmatprep.subr.bf16.mxu0 0
    %479 = vmatpush2.bf16.msra.mxu0 0
    %480 = vmatprep.subr.bf16.mxu0 0
    %481 = vmatpush2.bf16.msra.mxu0 0
    %482 = vmatprep.subr.bf16.mxu0 0
    %483 = vmatpush2.bf16.msra.mxu0 0
    %484 = vmatprep.subr.bf16.mxu0 0
    %485 = vmatpush2.bf16.msra.mxu0 0
    %486 = vmatprep.subr.bf16.mxu0 0
    %487 = vmatpush2.bf16.msra.mxu0 0
    %488 = vmatprep.subr.bf16.mxu0 0
    %489 = vmatpush2.bf16.msra.mxu0 0
    %490 = vmatprep.subr.bf16.mxu0 0
    %491 = vmatpush2.bf16.msra.mxu0 0
    %492 = vmatprep.mubr.bf16.mxu0 0
    %493 = vmatmul.mubr.bf16.gmra.mxu0 %v458
    %v494 = vpop.f32.mrf.mxu0
    %v495 = vadd.f32 %v325, %v494
    %v496 = vpop.f32.mrf.mxu0
    %v497 = vadd.f32 %v327, %v496
    %v498 = vpop.f32.mrf.mxu0
    %v499 = vadd.f32 %v329, %v498
    %v500 = vpop.f32.mrf.mxu0
    %v501 = vadd.f32 %v331, %v500
    %502 = vdwg.mxu0
    %503 = vmatprep.subr.bf16.mxu0 0
    %504 = vmatpush1.bf16.msra.mxu0 0
    %505 = vmatprep.subr.bf16.mxu0 0
    %506 = vmatpush1.bf16.msra.mxu0 0
    %507 = vmatprep.subr.bf16.mxu0 0
    %508 = vmatpush1.bf16.msra.mxu0 0
    %509 = vmatprep.subr.bf16.mxu0 0
    %510 = vmatpush1.bf16.msra.mxu0 0
    %511 = vmatprep.subr.bf16.mxu0 %v439
    %512 = vmatpush1.bf16.msra.mxu0 %v438
    %513 = vmatprep.subr.bf16.mxu0 %v435
    %514 = vmatpush1.bf16.msra.mxu0 %v434
    %515 = vmatprep.subr.bf16.mxu0 %v431
    %516 = vmatpush1.bf16.msra.mxu0 %v430
    %517 = vmatprep.subr.bf16.mxu0 %v427
    %518 = vmatpush1.bf16.msra.mxu0 %v426
    %519 = vmatprep.subr.bf16.mxu0 0
    %520 = vmatpush2.bf16.msra.mxu0 0
    %521 = vmatprep.subr.bf16.mxu0 0
    %522 = vmatpush2.bf16.msra.mxu0 0
    %523 = vmatprep.subr.bf16.mxu0 0
    %524 = vmatpush2.bf16.msra.mxu0 0
    %525 = vmatprep.subr.bf16.mxu0 0
    %526 = vmatpush2.bf16.msra.mxu0 0
    %527 = vmatprep.subr.bf16.mxu0 0
    %528 = vmatpush2.bf16.msra.mxu0 0
    %529 = vmatprep.subr.bf16.mxu0 0
    %530 = vmatpush2.bf16.msra.mxu0 0
    %531 = vmatprep.subr.bf16.mxu0 0
    %532 = vmatpush2.bf16.msra.mxu0 0
    %533 = vmatprep.subr.bf16.mxu0 0
    %534 = vmatpush2.bf16.msra.mxu0 0
    %535 = vmatprep.mubr.bf16.mxu0 0
    %536 = vmatmul.mubr.bf16.gmra.mxu0 %v458
    %v537 = vpop.f32.mrf.mxu0
    %v538 = vadd.f32 %v368, %v537
    %v539 = vpop.f32.mrf.mxu0
    %v540 = vadd.f32 %v370, %v539
    %v541 = vpop.f32.mrf.mxu0
    %v542 = vadd.f32 %v372, %v541
    %v543 = vpop.f32.mrf.mxu0
    %v544 = vadd.f32 %v374, %v543
    %545 = vdwg.mxu0
    %v546 = vld [vmem:[%s5] sm:$0xf]
    %v548 = vlaneseq
    %v549 = vshrl.u32 %v548, 7
    %v550 = vsub.s32 0, %v549
    %v551 = vrot.slane %v546, %v550
    %v552 = vlaneseq
    %v553 = vshrl.u32 %v552, 7
    %v554 = vsub.s32 1, %v553
    %v555 = vrot.slane %v546, %v554
    %v556 = vlaneseq
    %v557 = vshrl.u32 %v556, 7
    %v558 = vsub.s32 2, %v557
    %v559 = vrot.slane %v546, %v558
    %v560 = vlaneseq
    %v561 = vshrl.u32 %v560, 7
    %v562 = vsub.s32 3, %v561
    %v563 = vrot.slane %v546, %v562
    %v568 = vadd.f32 %v495, %v551
    %v569 = vadd.f32 %v497, %v555
    %v570 = vadd.f32 %v538, %v559
    %v571 = vadd.f32 %v540, %v563
    %v572 = vadd.f32 %v499, %v551
    %v573 = vadd.f32 %v501, %v555
    %v574 = vadd.f32 %v542, %v559
    %v575 = vadd.f32 %v544, %v563
    %v576 = vmax.f32 %v568, 0.0
    %v577 = vmax.f32 %v569, 0.0
    %v578 = vmax.f32 %v570, 0.0
    %v579 = vmax.f32 %v571, 0.0
    %v580 = vmax.f32 %v572, 0.0
    %v581 = vmax.f32 %v573, 0.0
    %v582 = vmax.f32 %v574, 0.0
    %v583 = vmax.f32 %v575, 0.0
    %v584 = vpack.c.bf16 %v580, %v576
    %v585 = vpack.c.bf16 %v581, %v577
    %v586 = vpack.c.bf16 %v582, %v578
    %v587 = vpack.c.bf16 %v583, %v579
    %v588 = vld [vmem:[#allocation5] sm:$0xf]
    %v589 = vld [vmem:[#allocation5 + $0x4] sm:$0xf]
    %v590 = vld [vmem:[#allocation5 + $0x8] sm:$0xf]
    %v591 = vld [vmem:[#allocation5 + $0xc] sm:$0xf]
    %v592 = vld [vmem:[#allocation5 + $0x10] sm:$0xf]
    %v593 = vld [vmem:[#allocation5 + $0x14] sm:$0xf]
    %v594 = vld [vmem:[#allocation5 + $0x18] sm:$0xf]
    %v595 = vld [vmem:[#allocation5 + $0x1c] sm:$0xf]
    %v596 = vld [vmem:[#allocation5 + $0x20] sm:$0xf]
    %v597 = vld [vmem:[#allocation5 + $0x24] sm:$0xf]
    %v598 = vld [vmem:[#allocation5 + $0x28] sm:$0xf]
    %v599 = vld [vmem:[#allocation5 + $0x2c] sm:$0xf]
    %v600 = vld [vmem:[#allocation5 + $0x30] sm:$0xf]
    %v601 = vld [vmem:[#allocation5 + $0x34] sm:$0xf]
    %v602 = vld [vmem:[#allocation5 + $0x38] sm:$0xf]
    %v603 = vld [vmem:[#allocation5 + $0x3c] sm:$0xf]
    %v604 = vld [vmem:[#allocation5 + $0x40] sm:$0xf]
    %v605 = vld [vmem:[#allocation5 + $0x44] sm:$0xf]
    %v606 = vld [vmem:[#allocation5 + $0x48] sm:$0xf]
    %v607 = vld [vmem:[#allocation5 + $0x4c] sm:$0xf]
    %v608 = vld [vmem:[#allocation5 + $0x50] sm:$0xf]
    %v609 = vld [vmem:[#allocation5 + $0x54] sm:$0xf]
    %v610 = vld [vmem:[#allocation5 + $0x58] sm:$0xf]
    %v611 = vld [vmem:[#allocation5 + $0x5c] sm:$0xf]
    %v612 = vld [vmem:[#allocation5 + $0x60] sm:$0xf]
    %v613 = vld [vmem:[#allocation5 + $0x64] sm:$0xf]
    %v614 = vld [vmem:[#allocation5 + $0x68] sm:$0xf]
    %v615 = vld [vmem:[#allocation5 + $0x6c] sm:$0xf]
    %v616 = vld [vmem:[#allocation5 + $0x70] sm:$0xf]
    %v617 = vld [vmem:[#allocation5 + $0x74] sm:$0xf]
    %v618 = vld [vmem:[#allocation5 + $0x78] sm:$0xf]
    %v619 = vld [vmem:[#allocation5 + $0x7c] sm:$0xf]
    %v620 = vld [vmem:[%s7] sm:$0x1]
    %v622 = vlaneseq
    %v623 = vshrl.u32 %v622, 7
    %v624 = vsub.s32 0, %v623
    %v625 = vrot.slane %v620, %v624
    %v659 = vunpack.c.l.b16 %v588
    %v660 = vunpack.c.l.b16 %v589
    %v661 = vunpack.c.l.b16 %v590
    %v662 = vunpack.c.l.b16 %v591
    %v663 = vunpack.c.l.b16 %v592
    %v664 = vunpack.c.l.b16 %v593
    %v665 = vunpack.c.l.b16 %v594
    %v666 = vunpack.c.l.b16 %v595
    %v667 = vunpack.c.l.b16 %v596
    %v668 = vunpack.c.l.b16 %v597
    %v669 = vunpack.c.l.b16 %v598
    %v670 = vunpack.c.l.b16 %v599
    %v671 = vunpack.c.l.b16 %v600
    %v672 = vunpack.c.l.b16 %v601
    %v673 = vunpack.c.l.b16 %v602
    %v674 = vunpack.c.l.b16 %v603
    %v675 = vunpack.c.l.b16 %v604
    %v676 = vunpack.c.l.b16 %v605
    %v677 = vunpack.c.l.b16 %v606
    %v678 = vunpack.c.l.b16 %v607
    %v679 = vunpack.c.l.b16 %v608
    %v680 = vunpack.c.l.b16 %v609
    %v681 = vunpack.c.l.b16 %v610
    %v682 = vunpack.c.l.b16 %v611
    %v683 = vunpack.c.l.b16 %v612
    %v684 = vunpack.c.l.b16 %v613
    %v685 = vunpack.c.l.b16 %v614
    %v686 = vunpack.c.l.b16 %v615
    %v687 = vunpack.c.l.b16 %v616
    %v688 = vunpack.c.l.b16 %v617
    %v689 = vunpack.c.l.b16 %v618
    %v690 = vunpack.c.l.b16 %v619
    %v691 = vpack.c.b16 %v660, %v659
    %v692 = vpack.c.b16 %v662, %v661
    %v693 = vpack.c.b16 %v664, %v663
    %v694 = vpack.c.b16 %v666, %v665
    %v695 = vpack.c.b16 %v668, %v667
    %v696 = vpack.c.b16 %v670, %v669
    %v697 = vpack.c.b16 %v672, %v671
    %v698 = vpack.c.b16 %v674, %v673
    %v699 = vpack.c.b16 %v676, %v675
    %v700 = vpack.c.b16 %v678, %v677
    %v701 = vpack.c.b16 %v680, %v679
    %v702 = vpack.c.b16 %v682, %v681
    %v703 = vpack.c.b16 %v684, %v683
    %v704 = vpack.c.b16 %v686, %v685
    %v705 = vpack.c.b16 %v688, %v687
    %v706 = vpack.c.b16 %v690, %v689
    %723 = vmatprep.subr.bf16.mxu0 0
    %724 = vmatpush1.bf16.msra.mxu0 %v698
    %725 = vmatprep.subr.bf16.mxu0 0
    %726 = vmatpush1.bf16.msra.mxu0 %v697
    %727 = vmatprep.subr.bf16.mxu0 0
    %728 = vmatpush1.bf16.msra.mxu0 %v696
    %729 = vmatprep.subr.bf16.mxu0 0
    %730 = vmatpush1.bf16.msra.mxu0 %v695
    %731 = vmatprep.subr.bf16.mxu0 0
    %732 = vmatpush1.bf16.msra.mxu0 %v694
    %733 = vmatprep.subr.bf16.mxu0 0
    %734 = vmatpush1.bf16.msra.mxu0 %v693
    %735 = vmatprep.subr.bf16.mxu0 0
    %736 = vmatpush1.bf16.msra.mxu0 %v692
    %737 = vmatprep.subr.bf16.mxu0 0
    %738 = vmatpush1.bf16.msra.mxu0 %v691
    %739 = vmatprep.subr.bf16.mxu0 0
    %740 = vmatpush2.bf16.msra.mxu0 %v706
    %741 = vmatprep.subr.bf16.mxu0 0
    %742 = vmatpush2.bf16.msra.mxu0 %v705
    %743 = vmatprep.subr.bf16.mxu0 0
    %744 = vmatpush2.bf16.msra.mxu0 %v704
    %745 = vmatprep.subr.bf16.mxu0 0
    %746 = vmatpush2.bf16.msra.mxu0 %v703
    %747 = vmatprep.subr.bf16.mxu0 0
    %748 = vmatpush2.bf16.msra.mxu0 %v702
    %749 = vmatprep.subr.bf16.mxu0 0
    %750 = vmatpush2.bf16.msra.mxu0 %v701
    %751 = vmatprep.subr.bf16.mxu0 0
    %752 = vmatpush2.bf16.msra.mxu0 %v700
    %753 = vmatprep.subr.bf16.mxu0 0
    %754 = vmatpush2.bf16.msra.mxu0 %v699
    %755 = vmatprep.mubr.bf16.mxu0 %v585
    %756 = vmatmul.mubr.bf16.gmra.mxu0 %v584
    %v757 = vpop.f32.mrf.mxu0
    %v758 = vadd.f32 %v625, %v757
    %v759 = vpop.f32.mrf.mxu0
    %v760 = vpop.f32.mrf.mxu0
    %v761 = vadd.f32 %v625, %v760
    %v762 = vpop.f32.mrf.mxu0
    %763 = vdwg.mxu0
    %v764 = vmax.f32 %v758, 0.0
    %v765 = vmax.f32 %v761, 0.0
    %766 = vst [vmem:[#allocation7] sm:$0xff] %v764
    %767 = vst [vmem:[#allocation7 + $0x10] sm:$0xff] %v765
    %s768 = scalar_lea.vmem [#allocation5], 128
    %v769 = vld [vmem:[%s768] sm:$0xf]
    %v770 = vld [vmem:[%s768 + $0x4] sm:$0xf]
    %v771 = vld [vmem:[%s768 + $0x8] sm:$0xf]
    %v772 = vld [vmem:[%s768 + $0xc] sm:$0xf]
    %v773 = vld [vmem:[%s768 + $0x10] sm:$0xf]
    %v774 = vld [vmem:[%s768 + $0x14] sm:$0xf]
    %v775 = vld [vmem:[%s768 + $0x18] sm:$0xf]
    %v776 = vld [vmem:[%s768 + $0x1c] sm:$0xf]
    %v777 = vld [vmem:[%s768 + $0x20] sm:$0xf]
    %v778 = vld [vmem:[%s768 + $0x24] sm:$0xf]
    %v779 = vld [vmem:[%s768 + $0x28] sm:$0xf]
    %v780 = vld [vmem:[%s768 + $0x2c] sm:$0xf]
    %v781 = vld [vmem:[%s768 + $0x30] sm:$0xf]
    %v782 = vld [vmem:[%s768 + $0x34] sm:$0xf]
    %v783 = vld [vmem:[%s768 + $0x38] sm:$0xf]
    %v784 = vld [vmem:[%s768 + $0x3c] sm:$0xf]
    %v785 = vld [vmem:[%s768 + $0x40] sm:$0xf]
    %v786 = vld [vmem:[%s768 + $0x44] sm:$0xf]
    %v787 = vld [vmem:[%s768 + $0x48] sm:$0xf]
    %v788 = vld [vmem:[%s768 + $0x4c] sm:$0xf]
    %v789 = vld [vmem:[%s768 + $0x50] sm:$0xf]
    %v790 = vld [vmem:[%s768 + $0x54] sm:$0xf]
    %v791 = vld [vmem:[%s768 + $0x58] sm:$0xf]
    %v792 = vld [vmem:[%s768 + $0x5c] sm:$0xf]
    %v793 = vld [vmem:[%s768 + $0x60] sm:$0xf]
    %v794 = vld [vmem:[%s768 + $0x64] sm:$0xf]
    %v795 = vld [vmem:[%s768 + $0x68] sm:$0xf]
    %v796 = vld [vmem:[%s768 + $0x6c] sm:$0xf]
    %v797 = vld [vmem:[%s768 + $0x70] sm:$0xf]
    %v798 = vld [vmem:[%s768 + $0x74] sm:$0xf]
    %v799 = vld [vmem:[%s768 + $0x78] sm:$0xf]
    %v800 = vld [vmem:[%s768 + $0x7c] sm:$0xf]
    %s801 = scalar_lea.vmem %s7, 1
    %v802 = vld [vmem:[%s801] sm:$0x1]
    %v804 = vlaneseq
    %v805 = vshrl.u32 %v804, 7
    %v806 = vsub.s32 0, %v805
    %v807 = vrot.slane %v802, %v806
    %v841 = vunpack.c.l.b16 %v769
    %v842 = vunpack.c.l.b16 %v770
    %v843 = vunpack.c.l.b16 %v771
    %v844 = vunpack.c.l.b16 %v772
    %v845 = vunpack.c.l.b16 %v773
    %v846 = vunpack.c.l.b16 %v774
    %v847 = vunpack.c.l.b16 %v775
    %v848 = vunpack.c.l.b16 %v776
    %v849 = vunpack.c.l.b16 %v777
    %v850 = vunpack.c.l.b16 %v778
    %v851 = vunpack.c.l.b16 %v779
    %v852 = vunpack.c.l.b16 %v780
    %v853 = vunpack.c.l.b16 %v781
    %v854 = vunpack.c.l.b16 %v782
    %v855 = vunpack.c.l.b16 %v783
    %v856 = vunpack.c.l.b16 %v784
    %v857 = vunpack.c.l.b16 %v785
    %v858 = vunpack.c.l.b16 %v786
    %v859 = vunpack.c.l.b16 %v787
    %v860 = vunpack.c.l.b16 %v788
    %v861 = vunpack.c.l.b16 %v789
    %v862 = vunpack.c.l.b16 %v790
    %v863 = vunpack.c.l.b16 %v791
    %v864 = vunpack.c.l.b16 %v792
    %v865 = vunpack.c.l.b16 %v793
    %v866 = vunpack.c.l.b16 %v794
    %v867 = vunpack.c.l.b16 %v795
    %v868 = vunpack.c.l.b16 %v796
    %v869 = vunpack.c.l.b16 %v797
    %v870 = vunpack.c.l.b16 %v798
    %v871 = vunpack.c.l.b16 %v799
    %v872 = vunpack.c.l.b16 %v800
    %v873 = vpack.c.b16 %v842, %v841
    %v874 = vpack.c.b16 %v844, %v843
    %v875 = vpack.c.b16 %v846, %v845
    %v876 = vpack.c.b16 %v848, %v847
    %v877 = vpack.c.b16 %v850, %v849
    %v878 = vpack.c.b16 %v852, %v851
    %v879 = vpack.c.b16 %v854, %v853
    %v880 = vpack.c.b16 %v856, %v855
    %v881 = vpack.c.b16 %v858, %v857
    %v882 = vpack.c.b16 %v860, %v859
    %v883 = vpack.c.b16 %v862, %v861
    %v884 = vpack.c.b16 %v864, %v863
    %v885 = vpack.c.b16 %v866, %v865
    %v886 = vpack.c.b16 %v868, %v867
    %v887 = vpack.c.b16 %v870, %v869
    %v888 = vpack.c.b16 %v872, %v871
    %905 = vmatprep.subr.bf16.mxu0 0
    %906 = vmatpush1.bf16.msra.mxu0 %v880
    %907 = vmatprep.subr.bf16.mxu0 0
    %908 = vmatpush1.bf16.msra.mxu0 %v879
    %909 = vmatprep.subr.bf16.mxu0 0
    %910 = vmatpush1.bf16.msra.mxu0 %v878
    %911 = vmatprep.subr.bf16.mxu0 0
    %912 = vmatpush1.bf16.msra.mxu0 %v877
    %913 = vmatprep.subr.bf16.mxu0 0
    %914 = vmatpush1.bf16.msra.mxu0 %v876
    %915 = vmatprep.subr.bf16.mxu0 0
    %916 = vmatpush1.bf16.msra.mxu0 %v875
    %917 = vmatprep.subr.bf16.mxu0 0
    %918 = vmatpush1.bf16.msra.mxu0 %v874
    %919 = vmatprep.subr.bf16.mxu0 0
    %920 = vmatpush1.bf16.msra.mxu0 %v873
    %921 = vmatprep.subr.bf16.mxu0 0
    %922 = vmatpush2.bf16.msra.mxu0 %v888
    %923 = vmatprep.subr.bf16.mxu0 0
    %924 = vmatpush2.bf16.msra.mxu0 %v887
    %925 = vmatprep.subr.bf16.mxu0 0
    %926 = vmatpush2.bf16.msra.mxu0 %v886
    %927 = vmatprep.subr.bf16.mxu0 0
    %928 = vmatpush2.bf16.msra.mxu0 %v885
    %929 = vmatprep.subr.bf16.mxu0 0
    %930 = vmatpush2.bf16.msra.mxu0 %v884
    %931 = vmatprep.subr.bf16.mxu0 0
    %932 = vmatpush2.bf16.msra.mxu0 %v883
    %933 = vmatprep.subr.bf16.mxu0 0
    %934 = vmatpush2.bf16.msra.mxu0 %v882
    %935 = vmatprep.subr.bf16.mxu0 0
    %936 = vmatpush2.bf16.msra.mxu0 %v881
    %937 = vmatprep.mubr.bf16.mxu0 %v587
    %938 = vmatmul.mubr.bf16.gmra.mxu0 %v586
    %v939 = vpop.f32.mrf.mxu0
    %v940 = vadd.f32 %v807, %v939
    %v941 = vpop.f32.mrf.mxu0
    %v942 = vpop.f32.mrf.mxu0
    %v943 = vadd.f32 %v807, %v942
    %v944 = vpop.f32.mrf.mxu0
    %945 = vdwg.mxu0
    %v946 = vmax.f32 %v940, 0.0
    %v947 = vmax.f32 %v943, 0.0
    %948 = vst [vmem:[#allocation7 + $0x8] sm:$0xff] %v946
    %949 = vst [vmem:[#allocation7 + $0x18] sm:$0xff] %v947
    // Predicated region
    $region42: #{tpu_custom_call.1} parent=1 // pred_check
      _
    $region43: #{tpu_custom_call.1} parent=1 // pred_check_branch
      %951 = sbr.rel (0) target = $region45
    $region44: #{tpu_custom_call.1} parent=1 // pred_region
      %s953 = ssub.s32 512, 512
      %954 = vsyncadd [#allocation4], %s953
      %s955 = sshll.u32 [#allocation7], 4
      %s956 = int_to_ptr.vmem [resolvable:$true] %s955
      %961 = dma.vmem_to_hbm [thread:$0]  %s956, 512, %s8, [#allocation4], 256, 256, 16
    $region45: #{tpu_custom_call.1} parent=1 // pred_fallthru
      _
    // Predicated region
    $region46: #{tpu_custom_call.1} parent=1 // pred_check
      _
    $region47: #{tpu_custom_call.1} parent=1 // pred_check_branch
      %963 = sbr.rel (0) target = $region49
    $region48: #{tpu_custom_call.1} parent=1 // pred_region
      %964 = dma.done [#allocation4], 512
    $region49: #{tpu_custom_call.1} parent=1 // pred_fallthru
      _
    %965 = vsyncpa [#allocation3], 1
    %966 = vsyncpa [#allocation6], 1
    %967 = vsyncpa [#allocation4], 1

</llo_original>
